<compile_context>
chip_gen: v5e
topology: v5e:2x2
jax: 0.10.0
libtpu: 0.0.40
codegen_flags: <defaults>
</compile_context>

<pallas_src>
import jax
import jax.numpy as jnp
from jax.experimental import pallas as pl
from jax.experimental.pallas import tpu as pltpu

_LANE = 128
_SUB = 8
_WIDE_C = 32  # threshold where unrolled channel loops switch to fori_loop


def _cdiv(a, b):
    return -(-a // b)


def _round_up(a, b):
    return _cdiv(a, b) * b


def _sse3d_kernel(wb_ref, x_ref, o_ref):
    # wb_ref: (C+1,) f32 scalar-prefetch ref in SMEM (wb[0:C] weights, wb[C] bias)
    # x_ref / o_ref: (1, C, tile_rows, 128) blocks in VMEM
    C = x_ref.shape[1]

    # 1x1x1 conv over channels: scalar-weighted f32 accumulation on the VPU.
    if C < _WIDE_C:
        acc = x_ref[0, 0].astype(jnp.float32) * wb_ref[0]
        for c in range(1, C):
            acc = acc + x_ref[0, c].astype(jnp.float32) * wb_ref[c]
    else:
        def acc_body(c, a):
            return a + x_ref[0, c].astype(jnp.float32) * wb_ref[c]
        acc = jax.lax.fori_loop(
            1, C, acc_body, x_ref[0, 0].astype(jnp.float32) * wb_ref[0])

    gate = jax.nn.sigmoid(acc + wb_ref[C])  # (tile_rows, 128) f32

    # Broadcast multiply; re-read the native-dtype tile per channel so only a
    # couple of upcast slabs are live at a time.
    if C < _WIDE_C:
        for c in range(C):
            o_ref[0, c] = (x_ref[0, c] * gate).astype(o_ref.dtype)
    else:
        def out_body(c, carry):
            o_ref[0, c] = (x_ref[0, c] * gate).astype(o_ref.dtype)
            return carry
        jax.lax.fori_loop(0, C, out_body, 0)


def spatial_se_3d(x, conv_w, conv_b, *, target_block_bytes=None):
    """x: (B, C, D, H, W); conv_w: (C,); conv_b: scalar."""
    B, C, D, H, W = x.shape
    S = D * H * W
    itemsize = jnp.dtype(x.dtype).itemsize

    # --- generation-aware VMEM / block-size budget --------------------------
    try:
        vmem_cap = int(getattr(pltpu.get_tpu_info(), "vmem_capacity_bytes",
                               64 << 20))
    except Exception:
        vmem_cap = 64 << 20  # conservative (v7x per-TC)
    if target_block_bytes is None:
        # ~8 MiB blocks on v7x (64 MiB VMEM), ~16 MiB on v5e/v6e (128 MiB).
        target_block_bytes = max(4 << 20, min(16 << 20, vmem_cap // 8))
    vmem_budget = (vmem_cap * 3) // 4 - (4 << 20)  # leave internal-scratch room

    # --- flatten spatial; pad only if S is not a lane multiple --------------
    x3 = x.reshape(B, C, S)
    S_lane = _round_up(S, _LANE)
    if S_lane != S:
        # TODO(synk): handle the sub-128 ragged tail with in-kernel masked
        # stores instead of this whole-tensor XLA pad/slice copy.
        x3 = jnp.pad(x3, ((0, 0), (0, 0), (0, S_lane - S)))
    rows_total = S_lane // _LANE
    x4 = x3.reshape(B, C, rows_total, _LANE)

    # --- tile-size selection (balanced, VMEM-aware) --------------------------
    bytes_per_row = C * _LANE * itemsize         # one (C, 1, 128) row, in/out dtype
    f32_row = _LANE * 4                          # one f32 temp row (acc/gate/...)
    # per-row VMEM cost: in + out, double-buffered, plus ~6 f32 temp slabs
    per_row_cost = 4 * bytes_per_row + 6 * f32_row

    if rows_total <= _SUB:
        tile_rows = rows_total                   # full-dim block (any size legal)
        n_blocks = 1
    else:
        cap_rows = min(target_block_bytes // bytes_per_row,
                       vmem_budget // per_row_cost)
        cap_rows = max(_SUB, (cap_rows // _SUB) * _SUB)
        tile_rows = min(cap_rows, (rows_total // _SUB) * _SUB)
        # Balance tiles across blocks so no block is nearly empty.
        n_blocks = _cdiv(rows_total, tile_rows)
        tile_rows = min(tile_rows, _round_up(_cdiv(rows_total, n_blocks), _SUB))
        n_blocks = _cdiv(rows_total, tile_rows)
        # Keep both TensorCores busy (v7x) when the grid would otherwise be 1.
        if B * n_blocks < 2 and rows_total > _SUB:
            tile_rows = max(_SUB, (_cdiv(rows_total, 2) // _SUB) * _SUB)
            n_blocks = _cdiv(rows_total, tile_rows)

    block_bytes = C * tile_rows * _LANE * itemsize
    # in + out double-buffered + f32 temporaries + headroom, clamped to 3/4 VMEM.
    vmem_limit = 4 * block_bytes + 6 * tile_rows * f32_row + (8 << 20)
    vmem_limit = int(min(max(32 << 20, vmem_limit), (vmem_cap * 3) // 4))

    # weights + bias packed into a single f32 scalar-prefetch operand
    wb = jnp.concatenate([
        conv_w.reshape(C).astype(jnp.float32),
        jnp.asarray(conv_b, jnp.float32).reshape(1),
    ])

    out = pl.pallas_call(
        _sse3d_kernel,
        out_shape=jax.ShapeDtypeStruct((B, C, rows_total, _LANE), x.dtype),
        grid_spec=pltpu.PrefetchScalarGridSpec(
            num_scalar_prefetch=1,
            grid=(B, n_blocks),
            in_specs=[
                pl.BlockSpec((1, C, tile_rows, _LANE),
                             lambda b, s, wb_ref: (b, 0, s, 0)),
            ],
            out_specs=pl.BlockSpec((1, C, tile_rows, _LANE),
                                   lambda b, s, wb_ref: (b, 0, s, 0)),
        ),
        compiler_params=pltpu.CompilerParams(
            dimension_semantics=("parallel", "parallel"),
            vmem_limit_bytes=vmem_limit,
        ),
    )(wb, x4)

    y = out.reshape(B, C, S_lane)
    if S_lane != S:
        y = y[:, :, :S]
    return y.reshape(B, C, D, H, W)


def spatial_se_3d_ref(x, conv_w, conv_b):
    # Pure-JAX reference of the PyTorch forward.
    pre = jnp.einsum("bcdhw,c->bdhw", x.astype(jnp.float32),
                     conv_w.astype(jnp.float32)) + conv_b
    gate = jax.nn.sigmoid(pre)[:, None]  # (B, 1, D, H, W)
    return (x.astype(jnp.float32) * gate).astype(x.dtype)


if __name__ == "__main__":
    B, C, D, H, W = 2, 4, 4, 16, 16  # flattened spatial = 1024 (lane aligned)

    key = jax.random.PRNGKey(0)
    kx, kw, kb = jax.random.split(key, 3)

    x = jax.random.normal(kx, (B, C, D, H, W), dtype=jnp.float32)
    # Deterministic synthetic parameters for nn.Conv3d(C, 1, 1):
    #   weight (1, C, 1, 1, 1) flattened to (C,); bias (1,) -> scalar.
    fan_in = C  # 1x1x1 kernel
    bound = 1.0 / (fan_in ** 0.5)
    conv_w = jax.random.uniform(kw, (C,), jnp.float32, -bound, bound)
    conv_b = jax.random.uniform(kb, (), jnp.float32, -bound, bound)

    y = spatial_se_3d(x, conv_w, conv_b)
    y = jax.block_until_ready(y)

    y_ref = spatial_se_3d_ref(x, conv_w, conv_b)
    assert y.shape == (B, C, D, H, W)
    assert jnp.allclose(y, y_ref, atol=1e-5, rtol=1e-5)

    print("KERNEL_OK")
</pallas_src>

<mosaic_0001>
module attributes {stable_mosaic.version = 11 : i64} {
  func.func @_sse3d_kernel(%arg0: i32, %arg1: i32, %arg2: memref<5xf32, #tpu.memory_space<smem>>, %arg3: memref<1x4x8x128xf32, #tpu.memory_space<vmem>>, %arg4: memref<1x4x8x128xf32, #tpu.memory_space<vmem>>) attributes {dimension_semantics = [#tpu.dimension_semantics<parallel>, #tpu.dimension_semantics<parallel>], iteration_bounds = array<i64: 2, 1>, scalar_prefetch = 1 : i64, scratch_operands = 0 : i64, tpu.core_type = #tpu.core_type<tc>, window_params = [{transform_indices = @transform_0, window_bounds = array<i64: 1, 4, 8, 128>}, {transform_indices = @transform_1, window_bounds = array<i64: 1, 4, 8, 128>}]} {
    %c0 = arith.constant 0 : index
    %c0_0 = arith.constant 0 : index
    %c0_1 = arith.constant 0 : index
    %c0_2 = arith.constant 0 : index
    %0 = vector.load %arg3[%c0, %c0_0, %c0_1, %c0_2] : memref<1x4x8x128xf32, #tpu.memory_space<vmem>>, vector<1x1x8x128xf32>
    %1 = vector.shape_cast %0 : vector<1x1x8x128xf32> to vector<8x128xf32>
    %c0_3 = arith.constant 0 : index
    %2 = memref.load %arg2[%c0_3] : memref<5xf32, #tpu.memory_space<smem>>
    %3 = vector.broadcast %2 : f32 to vector<8x128xf32>
    %4 = arith.mulf %1, %3 : vector<8x128xf32>
    %c0_4 = arith.constant 0 : index
    %c1 = arith.constant 1 : index
    %c0_5 = arith.constant 0 : index
    %c0_6 = arith.constant 0 : index
    %5 = vector.load %arg3[%c0_4, %c1, %c0_5, %c0_6] : memref<1x4x8x128xf32, #tpu.memory_space<vmem>>, vector<1x1x8x128xf32>
    %6 = vector.shape_cast %5 : vector<1x1x8x128xf32> to vector<8x128xf32>
    %c1_7 = arith.constant 1 : index
    %7 = memref.load %arg2[%c1_7] : memref<5xf32, #tpu.memory_space<smem>>
    %8 = vector.broadcast %7 : f32 to vector<8x128xf32>
    %9 = arith.mulf %6, %8 : vector<8x128xf32>
    %10 = arith.addf %4, %9 : vector<8x128xf32>
    %c0_8 = arith.constant 0 : index
    %c2 = arith.constant 2 : index
    %c0_9 = arith.constant 0 : index
    %c0_10 = arith.constant 0 : index
    %11 = vector.load %arg3[%c0_8, %c2, %c0_9, %c0_10] : memref<1x4x8x128xf32, #tpu.memory_space<vmem>>, vector<1x1x8x128xf32>
    %12 = vector.shape_cast %11 : vector<1x1x8x128xf32> to vector<8x128xf32>
    %c2_11 = arith.constant 2 : index
    %13 = memref.load %arg2[%c2_11] : memref<5xf32, #tpu.memory_space<smem>>
    %14 = vector.broadcast %13 : f32 to vector<8x128xf32>
    %15 = arith.mulf %12, %14 : vector<8x128xf32>
    %16 = arith.addf %10, %15 : vector<8x128xf32>
    %c0_12 = arith.constant 0 : index
    %c3 = arith.constant 3 : index
    %c0_13 = arith.constant 0 : index
    %c0_14 = arith.constant 0 : index
    %17 = vector.load %arg3[%c0_12, %c3, %c0_13, %c0_14] : memref<1x4x8x128xf32, #tpu.memory_space<vmem>>, vector<1x1x8x128xf32>
    %18 = vector.shape_cast %17 : vector<1x1x8x128xf32> to vector<8x128xf32>
    %c3_15 = arith.constant 3 : index
    %19 = memref.load %arg2[%c3_15] : memref<5xf32, #tpu.memory_space<smem>>
    %20 = vector.broadcast %19 : f32 to vector<8x128xf32>
    %21 = arith.mulf %18, %20 : vector<8x128xf32>
    %22 = arith.addf %16, %21 : vector<8x128xf32>
    %c4 = arith.constant 4 : index
    %23 = memref.load %arg2[%c4] : memref<5xf32, #tpu.memory_space<smem>>
    %24 = vector.broadcast %23 : f32 to vector<8x128xf32>
    %25 = arith.addf %22, %24 : vector<8x128xf32>
    %26 = arith.negf %25 : vector<8x128xf32>
    %27 = math.exp %26 : vector<8x128xf32>
    %cst = arith.constant 1.000000e+00 : f32
    %28 = vector.broadcast %cst : f32 to vector<8x128xf32>
    %29 = arith.addf %28, %27 : vector<8x128xf32>
    %30 = arith.divf %28, %29 : vector<8x128xf32>
    %c0_16 = arith.constant 0 : index
    %c0_17 = arith.constant 0 : index
    %c0_18 = arith.constant 0 : index
    %c0_19 = arith.constant 0 : index
    %31 = vector.load %arg3[%c0_16, %c0_17, %c0_18, %c0_19] : memref<1x4x8x128xf32, #tpu.memory_space<vmem>>, vector<1x1x8x128xf32>
    %32 = vector.shape_cast %31 : vector<1x1x8x128xf32> to vector<8x128xf32>
    %33 = arith.mulf %32, %30 : vector<8x128xf32>
    %c0_20 = arith.constant 0 : index
    %c0_21 = arith.constant 0 : index
    %c0_22 = arith.constant 0 : index
    %c0_23 = arith.constant 0 : index
    %34 = vector.load %arg4[%c0_20, %c0_21, %c0_22, %c0_23] : memref<1x4x8x128xf32, #tpu.memory_space<vmem>>, vector<1x1x8x128xf32>
    %35 = vector.shape_cast %34 : vector<1x1x8x128xf32> to vector<8x128xf32>
    %36 = vector.shape_cast %33 : vector<8x128xf32> to vector<1x1x8x128xf32>
    tpu.vector_store %arg4[%c0_20, %c0_21, %c0_22, %c0_23], %36 {strides = array<i32>} : memref<1x4x8x128xf32, #tpu.memory_space<vmem>>, vector<1x1x8x128xf32>,
    %c0_24 = arith.constant 0 : index
    %c1_25 = arith.constant 1 : index
    %c0_26 = arith.constant 0 : index
    %c0_27 = arith.constant 0 : index
    %37 = vector.load %arg3[%c0_24, %c1_25, %c0_26, %c0_27] : memref<1x4x8x128xf32, #tpu.memory_space<vmem>>, vector<1x1x8x128xf32>
    %38 = vector.shape_cast %37 : vector<1x1x8x128xf32> to vector<8x128xf32>
    %39 = arith.mulf %38, %30 : vector<8x128xf32>
    %c0_28 = arith.constant 0 : index
    %c1_29 = arith.constant 1 : index
    %c0_30 = arith.constant 0 : index
    %c0_31 = arith.constant 0 : index
    %40 = vector.load %arg4[%c0_28, %c1_29, %c0_30, %c0_31] : memref<1x4x8x128xf32, #tpu.memory_space<vmem>>, vector<1x1x8x128xf32>
    %41 = vector.shape_cast %40 : vector<1x1x8x128xf32> to vector<8x128xf32>
    %42 = vector.shape_cast %39 : vector<8x128xf32> to vector<1x1x8x128xf32>
    tpu.vector_store %arg4[%c0_28, %c1_29, %c0_30, %c0_31], %42 {strides = array<i32>} : memref<1x4x8x128xf32, #tpu.memory_space<vmem>>, vector<1x1x8x128xf32>,
    %c0_32 = arith.constant 0 : index
    %c2_33 = arith.constant 2 : index
    %c0_34 = arith.constant 0 : index
    %c0_35 = arith.constant 0 : index
    %43 = vector.load %arg3[%c0_32, %c2_33, %c0_34, %c0_35] : memref<1x4x8x128xf32, #tpu.memory_space<vmem>>, vector<1x1x8x128xf32>
    %44 = vector.shape_cast %43 : vector<1x1x8x128xf32> to vector<8x128xf32>
    %45 = arith.mulf %44, %30 : vector<8x128xf32>
    %c0_36 = arith.constant 0 : index
    %c2_37 = arith.constant 2 : index
    %c0_38 = arith.constant 0 : index
    %c0_39 = arith.constant 0 : index
    %46 = vector.load %arg4[%c0_36, %c2_37, %c0_38, %c0_39] : memref<1x4x8x128xf32, #tpu.memory_space<vmem>>, vector<1x1x8x128xf32>
    %47 = vector.shape_cast %46 : vector<1x1x8x128xf32> to vector<8x128xf32>
    %48 = vector.shape_cast %45 : vector<8x128xf32> to vector<1x1x8x128xf32>
    tpu.vector_store %arg4[%c0_36, %c2_37, %c0_38, %c0_39], %48 {strides = array<i32>} : memref<1x4x8x128xf32, #tpu.memory_space<vmem>>, vector<1x1x8x128xf32>,
    %c0_40 = arith.constant 0 : index
    %c3_41 = arith.constant 3 : index
    %c0_42 = arith.constant 0 : index
    %c0_43 = arith.constant 0 : index
    %49 = vector.load %arg3[%c0_40, %c3_41, %c0_42, %c0_43] : memref<1x4x8x128xf32, #tpu.memory_space<vmem>>, vector<1x1x8x128xf32>
    %50 = vector.shape_cast %49 : vector<1x1x8x128xf32> to vector<8x128xf32>
    %51 = arith.mulf %50, %30 : vector<8x128xf32>
    %c0_44 = arith.constant 0 : index
    %c3_45 = arith.constant 3 : index
    %c0_46 = arith.constant 0 : index
    %c0_47 = arith.constant 0 : index
    %52 = vector.load %arg4[%c0_44, %c3_45, %c0_46, %c0_47] : memref<1x4x8x128xf32, #tpu.memory_space<vmem>>, vector<1x1x8x128xf32>
    %53 = vector.shape_cast %52 : vector<1x1x8x128xf32> to vector<8x128xf32>
    %54 = vector.shape_cast %51 : vector<8x128xf32> to vector<1x1x8x128xf32>
    tpu.vector_store %arg4[%c0_44, %c3_45, %c0_46, %c0_47], %54 {strides = array<i32>} : memref<1x4x8x128xf32, #tpu.memory_space<vmem>>, vector<1x1x8x128xf32>,
    return
  }
  func.func @transform_0(%arg0: i32, %arg1: i32, %arg2: memref<5xf32, #tpu.memory_space<smem>>) -> (i32, i32, i32, i32) {
    %c0_i32 = arith.constant 0 : i32
    %c0_i32_0 = arith.constant 0 : i32
    %c0_i32_1 = arith.constant 0 : i32
    return %arg0, %c0_i32, %arg1, %c0_i32_0 : i32, i32, i32, i32
  }
  func.func @transform_1(%arg0: i32, %arg1: i32, %arg2: memref<5xf32, #tpu.memory_space<smem>>) -> (i32, i32, i32, i32) {
    %c0_i32 = arith.constant 0 : i32
    %c0_i32_0 = arith.constant 0 : i32
    %c0_i32_1 = arith.constant 0 : i32
    return %arg0, %c0_i32, %arg1, %c0_i32_0 : i32, i32, i32, i32
  }
}

</mosaic_0001>

<llo_original>
// kernel: tpu_custom_call.1
$region0: #{tpu_custom_call.1}
  #allocation0 [shape = 'u32[]', space=smem, size = 0x4, offset = 0x4, fixed_abs, tag = 'smem constant byte address 0x4 - core index']
  #allocation1 [shape = 'u32[72,128]{1,0:T(1,128)}', space=vmem, size = 0x9000, scoped, tag = 'internal scratch']
  #allocation2 [shape = 's32[1]{0}', space=sflag, size = 0x4, scoped, tag = 'scoped memory for tpu_custom_call.1']
  #allocation3 [shape = 'u8[512]{0}', space=smem, size = 0x200, scoped, tag = 'prefetched SMEM operand 0']
  %s0 = inlined_call_operand.hbm [shape: f32[5], index: 0, kind: input, shape index: {}]
  %s1 = inlined_call_operand.hbm [shape: f32[2,4,8,128], index: 1, kind: input, shape index: {}]
  %s2 = inlined_call_operand.hbm [shape: f32[2,4,8,128], index: 2, kind: output, shape index: {}]
  %s3 = sld [smem:[#allocation0]]
  $region41: #{tpu_custom_call.1} parent=0
    _
  %s5 = ssub.s32 1, %s3
  %s6 = scalar_select 0, %s5, %s3
  %s8 = sshll.u32 %s0, 4
  %s9 = int_to_ptr.hbm [resolvable:$true] %s8
  %11 = dma.hbm_to_smem %s9, 16, [#allocation3], [#allocation2]
  %13 = dma.done [#allocation2], 16
  %14 = sfence
  $region1: #{tpu_custom_call.1} parent=0
    #allocation4 [shape = 'u8[32768]{0}', space=vmem, size = 0x8000, scoped, tag = 'input window, operand 1']
    #allocation5 [shape = 's32[2]{0}', space=sflag, size = 0x8, scoped, tag = 'scoped memory for tpu_custom_call.1']
    #allocation6 [shape = 's32[2]{0}', space=sflag, size = 0x8, scoped, tag = 'scoped memory for tpu_custom_call.1']
    #allocation7 [shape = 'u8[32768]{0}', space=vmem, size = 0x8000, scoped, tag = 'output window, operand 0']
    %15 = vsyncpa [#allocation5], 0
    %s16 = scalar_lea.sflag [#allocation5], 1
    %17 = vsyncpa %s16, 0
    %18 = vsyncpa [#allocation6], 0
    %s19 = scalar_lea.sflag [#allocation6], 1
    %20 = vsyncpa %s19, 0
    loop: start=0, step=1, limit=4
    $region2: #{tpu_custom_call.1} parent=1 // loop_pre_header
      _
    $region3: #{tpu_custom_call.1} parent=1 // loop_header
      %s22 = sphi 0, %s26
      %p23 = scmp.ge.s32.totalorder %s22, 4
      %s29 = sphi 0, %s41
      %s30 = sphi 0, %s37
      %s31 = sphi 0, %s29
      %s32 = sphi 0, %s30
      %s33 = sphi 0, %s31
      %s34 = sphi 0, %s32
      %s46 = sphi 0, %s48
      %s49 = sphi 0, %s46
      %s50 = sphi 0, %s49
      %s66 = sphi 0, %s50
      %s74 = sphi 0, %s76
      %s77 = sphi 0, %s74
      %s78 = sphi 0, %s77
      %s94 = sphi 0, %s78
    $region4: #{tpu_custom_call.1} parent=1 // loop_header_branch
      %25 = sbr.rel (%p23) target = $region8
    $region5: #{tpu_custom_call.1} parent=1 // loop_body
      %s27 = ssub.s32 %s22, 1
      %s28 = ssub.s32 %s22, 2
      %s35 = sadd.s32 1, %s30
      %p36 = scmp.ge.s32.totalorder %s35, 1
      %s37 = scalar_select %p36, 0, %s35
      %s38 = sadd.s32 1, %s29
      %s39 = scalar_select %p36, %s38, %s29
      %p40 = scmp.ge.s32.totalorder %s39, 2
      %s41 = scalar_select %p40, 0, %s39
      %s42 = ssub.s32 %s29, %s41
      %s43 = ssub.s32 %s30, %s37
      %s44 = sor.u32 %s42, %s43
      %p45 = scmp.eq.s32.totalorder %s44, 0
      %s47 = sadd.s32 %s46, 1
      %s48 = scalar_select %p45, %s46, %s47
      %p51 = pneg %p45
      %p52 = scmp.eq.s32.totalorder %s22, 1
      %p53 = por %p51, %p52
      %p54 = scmp.ne.s32.totalorder %s46, %s49
      %p55 = scmp.eq.s32.totalorder %s22, 0
      %p56 = por %p54, %p55
      %p57 = scmp.ne.s32.totalorder %s46, %s49
      %p58 = scmp.eq.s32.totalorder %s27, 1
      %p59 = por %p57, %p58
      %p60 = scmp.ne.s32.totalorder %s49, %s50
      %p61 = scmp.eq.s32.totalorder %s27, 0
      %p62 = por %p60, %p61
      %p63 = scmp.ne.s32.totalorder %s49, %s50
      %p64 = scmp.eq.s32.totalorder %s28, 1
      %p65 = por %p63, %p64
      %p67 = scmp.ne.s32.totalorder %s50, %s66
      %p68 = scmp.eq.s32.totalorder %s28, 0
      %p69 = por %p67, %p68
      %s70 = ssub.s32 %s29, %s41
      %s71 = ssub.s32 %s30, %s37
      %s72 = sor.u32 %s70, %s71
      %p73 = scmp.eq.s32.totalorder %s72, 0
      %s75 = sadd.s32 %s74, 1
      %s76 = scalar_select %p73, %s74, %s75
      %p79 = pneg %p73
      %p80 = scmp.eq.s32.totalorder %s22, 1
      %p81 = por %p79, %p80
      %p82 = scmp.ne.s32.totalorder %s74, %s77
      %p83 = scmp.eq.s32.totalorder %s22, 0
      %p84 = por %p82, %p83
      %p85 = scmp.ne.s32.totalorder %s74, %s77
      %p86 = scmp.eq.s32.totalorder %s27, 1
      %p87 = por %p85, %p86
      %p88 = scmp.ne.s32.totalorder %s77, %s78
      %p89 = scmp.eq.s32.totalorder %s27, 0
      %p90 = por %p88, %p89
      %p91 = scmp.ne.s32.totalorder %s77, %s78
      %p92 = scmp.eq.s32.totalorder %s28, 1
      %p93 = por %p91, %p92
      %p95 = scmp.ne.s32.totalorder %s78, %s94
      %p96 = scmp.eq.s32.totalorder %s28, 0
      %p97 = por %p95, %p96
      %p98 = scmp.le.s32.totalorder 1, %s22
      %p99 = scmp.lt.s32.totalorder %s22, 3
      %p100 = pnand %p98, %p99
      %p101 = pneg %p100
      // Predicated region
      $region9: #{tpu_custom_call.1} parent=5 // pred_check
        _
      $region10: #{tpu_custom_call.1} parent=5 // pred_check_branch
        %103 = sbr.rel (%p100) target = $region12
      $region11: #{tpu_custom_call.1} parent=5 // pred_region
        %s104 = ssub.s32 %s22, 1
      $region12: #{tpu_custom_call.1} parent=5 // pred_fallthru
        _
      %p105 = scmp.lt.s32.totalorder %s22, 2
      // Predicated region
      $region13: #{tpu_custom_call.1} parent=5 // pred_check
        %p106 = pneg %p105
      $region14: #{tpu_custom_call.1} parent=5 // pred_check_branch
        %108 = sbr.rel (%p106) target = $region16
      $region15: #{tpu_custom_call.1} parent=5 // pred_region
        // Predicated region
        $region17: #{tpu_custom_call.1} parent=15 // pred_check
          %p109 = pneg %p56
        $region18: #{tpu_custom_call.1} parent=15 // pred_check_branch
          %111 = sbr.rel (%p109) target = $region20
        $region19: #{tpu_custom_call.1} parent=15 // pred_region
          %s112 = sand.u32 %s46, 1
          %s113 = scalar_lea.sflag [#allocation5], %s112
          %s114 = sand.u32 %s46, 1
          %s115 = smul.addr %s114, 32
          %s116 = scalar_lea.vmem [#allocation4], %s115
          %118 = vsyncadd %s113, 0
          %s119 = smul.addr %s29, 4
          %s120 = sadd.s32 %s30, %s119
          %s121 = smul.addr %s120, 8
          %s122 = scalar_lea.hbm %s1, %s121
          %s123 = sshll.u32 %s122, 4
          %s124 = int_to_ptr.hbm [resolvable:$true] %s123
          %s125 = sshll.u32 %s116, 4
          %s126 = int_to_ptr.vmem [resolvable:$true] %s125
          %131 = dma.hbm_to_vmem [thread:$0]  %s124, 512, %s126, %s113, 128, 128, 8
        $region20: #{tpu_custom_call.1} parent=15 // pred_fallthru
          _
      $region16: #{tpu_custom_call.1} parent=5 // pred_fallthru
        _
      %p132 = scmp.le.s32.totalorder 1, %s22
      %p133 = scmp.lt.s32.totalorder %s22, 3
      %p134 = pnand %p132, %p133
      %p135 = pneg %p134
      // Predicated region
      $region21: #{tpu_custom_call.1} parent=5 // pred_check
        _
      $region22: #{tpu_custom_call.1} parent=5 // pred_check_branch
        %137 = sbr.rel (%p134) target = $region24
      $region23: #{tpu_custom_call.1} parent=5 // pred_region
        %s138 = ssub.s32 %s22, 1
        %s139 = sand.u32 %s49, 1
        %s140 = scalar_lea.sflag [#allocation5], %s139
        %s141 = sand.u32 %s49, 1
        %s142 = smul.addr %s141, 32
        %s143 = scalar_lea.vmem [#allocation4], %s142
        // Predicated region
        $region25: #{tpu_custom_call.1} parent=23 // pred_check
          %p144 = pneg %p62
        $region26: #{tpu_custom_call.1} parent=23 // pred_check_branch
          %146 = sbr.rel (%p144) target = $region28
        $region27: #{tpu_custom_call.1} parent=23 // pred_region
          %148 = dma.done %s140, 512
        $region28: #{tpu_custom_call.1} parent=23 // pred_fallthru
          _
        %s149 = sand.u32 %s49, 1
        %s150 = scalar_lea.sflag [#allocation5], %s149
        %s151 = sand.u32 %s49, 1
        %s152 = smul.addr %s151, 32
        %s153 = scalar_lea.vmem [#allocation4], %s152
        %p154 = pneg %p62
        %p155 = pneg %p59
        %p156 = pneg %p90
        %p157 = pneg %p87
        %s158 = sand.u32 %s77, 1
        %s159 = scalar_lea.sflag [#allocation6], %s158
        %s160 = sand.u32 %s77, 1
        %s161 = smul.addr %s160, 32
        %s162 = scalar_lea.vmem [#allocation7], %s161
        %v163 = vld [vmem:[%s143] sm:$0xff]
        %s164 = sld [smem:[#allocation3]]
        %v165 = vstv %s164
        %v166 = vmul.f32 %v163, %v165
        %s167 = scalar_lea.vmem %s143, 8 [#allocation4]
        %v168 = vld [vmem:[%s167] sm:$0xff]
        %s169 = sld [smem:[#allocation3 + $0x1]]
        %v170 = vstv %s169
        %v171 = vmul.f32 %v168, %v170
        %v172 = vadd.f32 %v166, %v171
        %s173 = scalar_lea.vmem %s143, 16 [#allocation4]
        %v174 = vld [vmem:[%s173] sm:$0xff]
        %s175 = sld [smem:[#allocation3 + $0x2]]
        %v176 = vstv %s175
        %v177 = vmul.f32 %v174, %v176
        %v178 = vadd.f32 %v172, %v177
        %s179 = scalar_lea.vmem %s143, 24 [#allocation4]
        %v180 = vld [vmem:[%s179] sm:$0xff]
        %s181 = sld [smem:[#allocation3 + $0x3]]
        %v182 = vstv %s181
        %v183 = vmul.f32 %v180, %v182
        %v184 = vadd.f32 %v178, %v183
        %s185 = sld [smem:[#allocation3 + $0x4]]
        %v186 = vstv %s185
        %v187 = vadd.f32 %v184, %v186
        %v188 = vxor.u32 %v187, 2147483648
        %v189 = vmul.f32 %v188, 1.442695
        %v190 = vpow.pop %v189
        %v191 = vadd.f32 %v190, 1.0
        %v192 = vrcp.pop %v191
        %v193 = vmul.f32 %v191, %v192
        %v194 = vsub.f32 1.0, %v193
        %v195 = vmul.f32 %v192, %v194
        %v196 = vadd.f32 %v192, %v195
        %vm197 = vweird.f32 %v191
        %vm198 = vweird.f32 %v192
        %vm199 = vmor %vm197, %vm198
        %v200 = vsel %vm199, %v192, %v196
        %v201 = vand.u32 2147483647, %v191
        %vm202 = vcmp.eq.f32.partialorder %v201, 8.507059e+37
        %v203 = vand.u32 %v191, 2147483648
        %v204 = vor.u32 1.1754944e-38, %v203
        %v205 = vsel %vm202, %v204, %v200
        %v206 = vmul.f32 1.0, %v205
        %v207 = vmul.f32 %v163, %v206
        %208 = vst [vmem:[%s162] sm:$0xff] %v207
        %v209 = vld [vmem:[%s167] sm:$0xff]
        %v210 = vmul.f32 %v209, %v206
        %s211 = scalar_lea.vmem %s162, 8 [#allocation7]
        %212 = vst [vmem:[%s211] sm:$0xff] %v210
        %v213 = vld [vmem:[%s173] sm:$0xff]
        %v214 = vmul.f32 %v213, %v206
        %s215 = scalar_lea.vmem %s162, 16 [#allocation7]
        %216 = vst [vmem:[%s215] sm:$0xff] %v214
        %v217 = vld [vmem:[%s179] sm:$0xff]
        %v218 = vmul.f32 %v217, %v206
        %s219 = scalar_lea.vmem %s162, 24 [#allocation7]
        %220 = vst [vmem:[%s219] sm:$0xff] %v218
        %s221 = sand.u32 %s77, 1
        %s222 = scalar_lea.sflag [#allocation6], %s221
        %s223 = sand.u32 %s77, 1
        %s224 = smul.addr %s223, 32
        %s225 = scalar_lea.vmem [#allocation7], %s224
        // Predicated region
        $region29: #{tpu_custom_call.1} parent=23 // pred_check
          %p226 = pneg %p87
        $region30: #{tpu_custom_call.1} parent=23 // pred_check_branch
          %228 = sbr.rel (%p226) target = $region32
        $region31: #{tpu_custom_call.1} parent=23 // pred_region
          %230 = vsyncadd %s222, 0
          %s231 = smul.addr %s31, 4
          %s232 = sadd.s32 %s32, %s231
          %s233 = smul.addr %s232, 8
          %s234 = scalar_lea.hbm %s2, %s233
          %s235 = sshll.u32 %s225, 4
          %s236 = int_to_ptr.vmem [resolvable:$true] %s235
          %s237 = sshll.u32 %s234, 4
          %s238 = int_to_ptr.hbm [resolvable:$true] %s237
          %243 = dma.vmem_to_hbm [thread:$0]  %s236, 512, %s238, %s222, 128, 128, 8
        $region32: #{tpu_custom_call.1} parent=23 // pred_fallthru
          _
      $region24: #{tpu_custom_call.1} parent=5 // pred_fallthru
        _
      %p244 = scmp.le.s32.totalorder 2, %s22
      // Predicated region
      $region33: #{tpu_custom_call.1} parent=5 // pred_check
        %p245 = pneg %p244
      $region34: #{tpu_custom_call.1} parent=5 // pred_check_branch
        %247 = sbr.rel (%p245) target = $region36
      $region35: #{tpu_custom_call.1} parent=5 // pred_region
        %s248 = ssub.s32 %s22, 2
        // Predicated region
        $region37: #{tpu_custom_call.1} parent=35 // pred_check
          %p249 = pneg %p93
        $region38: #{tpu_custom_call.1} parent=35 // pred_check_branch
          %251 = sbr.rel (%p249) target = $region40
        $region39: #{tpu_custom_call.1} parent=35 // pred_region
          %s252 = sand.u32 %s78, 1
          %s253 = scalar_lea.sflag [#allocation6], %s252
          %s254 = sand.u32 %s78, 1
          %s255 = smul.addr %s254, 32
          %s256 = scalar_lea.vmem [#allocation7], %s255
          %258 = dma.done %s253, 512
        $region40: #{tpu_custom_call.1} parent=35 // pred_fallthru
          _
      $region36: #{tpu_custom_call.1} parent=5 // pred_fallthru
        _
    $region6: #{tpu_custom_call.1} parent=1 // loop_footer
      %s26 = sadd.s32 1, %s22
    $region7: #{tpu_custom_call.1} parent=1 // loop_footer_branch
      %21 = sbr.rel target = $region3
    $region8: #{tpu_custom_call.1} parent=1 // loop_exit
      _
    %259 = vsyncpa [#allocation5], 1
    %s260 = scalar_lea.sflag [#allocation5], 1
    %261 = vsyncpa %s260, 1
    %262 = vsyncpa [#allocation6], 1
    %s263 = scalar_lea.sflag [#allocation6], 1
    %264 = vsyncpa %s263, 1

</llo_original>
